<compile_context>
chip_gen: v7x
topology: tpu7x:2x2x1
jax: 0.10.0
libtpu: 0.0.40
codegen_flags: <defaults>
</compile_context>

<pallas_src>
import functools

import jax
import jax.numpy as jnp
from jax.experimental import pallas as pl
from jax.experimental.pallas import tpu as pltpu


_LANE_CHUNK = 512                 # lanes per streamed chunk over the class axis
_ROW_STAT_BYTES = 16 * 128 * 4    # ~16 live lane-padded (TB,1) f32 vectors per row


def _gcod_kernel(logits_ref, targets_ref, u_ref, out_ref,
                 acc_l1, acc_l2, acc_u2, acc_kl, col_ref, *,
                 batch: int, block_rows: int, steps_per_part: int,
                 alpha_train: float, chunk_c: int, masked: bool):
    p = pl.program_id(0)
    i = pl.program_id(1)

    @pl.when(i == 0)
    def _init():
        # Zero this partition's vector accumulators and (re)fill the tiny
        # grid-invariant column-index scratch (hoisted out of the main body).
        acc_l1[...] = jnp.zeros_like(acc_l1)
        acc_l2[...] = jnp.zeros_like(acc_l2)
        acc_u2[...] = jnp.zeros_like(acc_u2)
        acc_kl[...] = jnp.zeros_like(acc_kl)
        col_ref[...] = jax.lax.broadcasted_iota(jnp.int32, col_ref.shape, 1)

    TB = block_rows
    C = col_ref.shape[1]
    tgt = targets_ref[...]                              # (TB, 1) int32
    u = u_ref[...].astype(jnp.float32)                  # (TB, 1) f32

    starts = list(range(0, C, chunk_c))
    chunks = [(c0, min(c0 + chunk_c, C)) for c0 in starts]

    if len(chunks) == 1:
        # Small class count: single fused pass, the logits tile is loaded once.
        blk = logits_ref[...].astype(jnp.float32)       # (TB, C)
        col = col_ref[0:1, :]                           # (1, C)
        diag = jnp.sum(jnp.where(col == tgt, blk, 0.0), axis=1, keepdims=True)
        m = jnp.max(blk, axis=1, keepdims=True)
        ez = jnp.exp(blk - m)
        s = jnp.sum(ez, axis=1, keepdims=True)
        s2 = jnp.sum(ez * ez, axis=1, keepdims=True)
    else:
        # Streamed over lane chunks so exp(z) / exp(z)^2 are never written back
        # full width (vst-bound on v6e, VMEM working set on v7x).
        m = jnp.full((TB, 1), -jnp.inf, dtype=jnp.float32)
        diag = jnp.zeros((TB, 1), dtype=jnp.float32)
        for c0, c1 in chunks:                           # pass 1: max + true-class logit
            blk = logits_ref[:, c0:c1].astype(jnp.float32)
            m = jnp.maximum(m, jnp.max(blk, axis=1, keepdims=True))
            col = col_ref[0:1, c0:c1]
            diag = diag + jnp.sum(jnp.where(col == tgt, blk, 0.0),
                                  axis=1, keepdims=True)
        s = jnp.zeros((TB, 1), dtype=jnp.float32)
        s2 = jnp.zeros((TB, 1), dtype=jnp.float32)
        for c0, c1 in chunks:                           # pass 2: exp sums
            ez = jnp.exp(logits_ref[:, c0:c1].astype(jnp.float32) - m)
            s = s + jnp.sum(ez, axis=1, keepdims=True)
            s2 = s2 + jnp.sum(ez * ez, axis=1, keepdims=True)

    # Per-row statistics (softmax itself is never materialized).
    rs = pl.reciprocal(s)              # exact divide; approx=True would hurt accuracy
    ce = (m + jnp.log(s)) - diag       # cross-entropy rows
    p_true = jnp.exp(diag - m) * rs    # softmax prob of the true class

    # L1 rows: CE + alpha * u * p_true
    l1_rows = ce + alpha_train * (u * p_true)

    # L2 rows: ||softmax + u*onehot - onehot||^2, algebraically fused.
    resid = p_true + u - 1.0
    l2_rows = s2 * (rs * rs) - p_true * p_true + resid * resid
    u2_rows = u * u

    # t = sigmoid(-log(u+1e-8)) == 1/(1+u+1e-8);  log t == -log(1+u+1e-8)
    up1 = 1.0 + (u + 1e-8)
    t = pl.reciprocal(up1)
    kl_rows = t * (-jnp.log(up1) - jax.nn.log_sigmoid(diag))

    if masked:
        # Padded / clamped rows may hold garbage (even NaN/Inf): remove them
        # with a select (never a multiply) so nothing can leak into the sums.
        row = jax.lax.broadcasted_iota(jnp.int32, (TB, 1), 0)
        base = (p * steps_per_part + i) * TB
        valid = (base + row) < batch

        def _sel(x):
            return jnp.where(valid, x, 0.0)
    else:
        def _sel(x):
            return x

    acc_l1[...] = acc_l1[...] + _sel(l1_rows)
    acc_l2[...] = acc_l2[...] + _sel(l2_rows)
    acc_u2[...] = acc_u2[...] + _sel(u2_rows)
    acc_kl[...] = acc_kl[...] + _sel(kl_rows)

    @pl.when(i == pl.num_programs(1) - 1)
    def _finalize():
        # One cross-sublane collapse per partition (not per step).
        s_l1 = jnp.sum(acc_l1[...])
        s_l2 = jnp.sum(acc_l2[...])
        s_u2 = jnp.sum(acc_u2[...])
        s_kl = jnp.sum(acc_kl[...])
        sub = jax.lax.broadcasted_iota(jnp.int32, (8, 128), 0)
        lane = jax.lax.broadcasted_iota(jnp.int32, (8, 128), 1)
        tile = jnp.where((sub == 0) & (lane == 0), s_l1, 0.0)
        tile = jnp.where((sub == 0) & (lane == 1), s_l2, tile)
        tile = jnp.where((sub == 0) & (lane == 2), s_u2, tile)
        tile = jnp.where((sub == 0) & (lane == 3), s_kl, tile)
        out_ref[...] = tile


def _vmem_capacity_bytes():
    try:
        return int(pltpu.get_tpu_info().vmem_capacity_bytes)
    except Exception:
        return 64 << 20   # smallest current part (v7x): safe on every generation


def _per_row_vmem_bytes(num_classes, itemsize):
    chunk_c = min(num_classes, _LANE_CHUNK)
    return (2 * num_classes * int(itemsize)   # double-buffered logits rows
            + 6 * chunk_c * 4                 # chunk-wide f32 temporaries
            + _ROW_STAT_BYTES)                # lane-padded (TB,1) stats/accs/inputs


def _pick_block_rows(batch, num_classes, itemsize, vmem_capacity):
    """Batch-tile rows sized from the f32 working set, sublane-aligned."""
    align = 8 * max(1, 4 // int(itemsize))       # 8 rows f32, 16 bf16, 32 int8
    budget = max(2 << 20, vmem_capacity // 4)    # ~16 MiB v7x, ~32 MiB v5e/v6e
    rows = budget // _per_row_vmem_bytes(num_classes, itemsize)
    rows = max(align, min(8192, int(rows)))      # small C => allow large tiles
    rows = (rows // align) * align
    if batch >= align:
        rows = min(rows, (batch // align) * align)
    else:
        rows = align
    return max(align, rows)


def gcod_loss(logits, targets, u_params, training_accuracy, *,
              num_classes, alpha_train=5.0, lambda_r=0.5):
    B, C = logits.shape
    assert C == num_classes
    if B == 0:
        z = jnp.float32(0.0)
        return z, z, z, z

    targets2d = targets.astype(jnp.int32).reshape(B, 1)
    u2d = u_params.astype(jnp.float32).reshape(B, 1)
    acc = jnp.asarray(training_accuracy, dtype=jnp.float32)

    itemsize = jnp.dtype(logits.dtype).itemsize
    capacity = _vmem_capacity_bytes()
    TB = _pick_block_rows(B, C, itemsize, capacity)
    nb = pl.cdiv(B, TB)

    # Split the batch reduction into P partitions; the "parallel" leading grid
    # axis shards them over the 2 TensorCores on v7x (no-op on 1-TC parts).
    P = 2 if nb >= 2 else 1
    NI = pl.cdiv(nb, P)
    masked = (P * NI * TB) != B

    def tile_map(p, i):
        # Clamp so the (rare) extra step of an odd tile count re-reads the last
        # tile; its rows compute >= B and are removed by the in-kernel select.
        return (jnp.minimum(p * NI + i, nb - 1), 0)

    chunk_c = min(C, _LANE_CHUNK)
    working = TB * _per_row_vmem_bytes(C, itemsize) + 8 * max(C, 128) * 4 + (2 << 20)
    hard_cap = (28 << 20) if capacity <= (64 << 20) else (48 << 20)
    vmem_limit = int(min(hard_cap, max(8 << 20, working)))

    kernel = functools.partial(
        _gcod_kernel, batch=B, block_rows=TB, steps_per_part=int(NI),
        alpha_train=float(alpha_train), chunk_c=int(chunk_c), masked=bool(masked))

    # TODO(synk): on v5e consider pipeline_mode=pl.Buffered(3) on the logits
    # BlockSpec (short per-tile compute, lower HBM bandwidth exposes DMA).
    out_flat = pl.pallas_call(
        kernel,
        out_shape=jax.ShapeDtypeStruct((P * 8, 128), jnp.float32),
        grid_spec=pltpu.PrefetchScalarGridSpec(
            num_scalar_prefetch=0,
            grid=(P, int(NI)),
            in_specs=[
                pl.BlockSpec((TB, C), tile_map),   # logits tile
                pl.BlockSpec((TB, 1), tile_map),   # targets tile
                pl.BlockSpec((TB, 1), tile_map),   # u tile
            ],
            out_specs=pl.BlockSpec((8, 128), lambda p, i: (p, 0)),
            scratch_shapes=[
                pltpu.VMEM((TB, 1), jnp.float32),  # sum of L1 rows
                pltpu.VMEM((TB, 1), jnp.float32),  # sum of L2 reconstruction rows
                pltpu.VMEM((TB, 1), jnp.float32),  # sum of u^2 rows
                pltpu.VMEM((TB, 1), jnp.float32),  # sum of KL rows
                pltpu.VMEM((8, C), jnp.int32),     # hoisted column-index iota
            ],
        ),
        compiler_params=pltpu.CompilerParams(
            dimension_semantics=("parallel", "arbitrary"),
            vmem_limit_bytes=vmem_limit,
        ),
        cost_estimate=pl.CostEstimate(
            flops=12 * B * C + 48 * B,
            transcendentals=B * C + 4 * B,
            bytes_accessed=B * C * int(itemsize) + 8 * B + P * 8 * 128 * 4,
        ),
    )(logits, targets2d, u2d)

    # Combine the per-partition (per-core) partial sums; apply all scaling here.
    sums = jnp.sum(out_flat.reshape(P, 8, 128)[:, 0, 0:4], axis=0)
    L1 = sums[0] / B
    L2 = sums[1] / num_classes + lambda_r * sums[2]
    L3 = (1.0 - acc) * (sums[3] / B)
    return L1 + L3, L1, L2, L3


def _reference(logits, targets, u, acc, num_classes, alpha_train=5.0, lambda_r=0.5):
    """Plain-JAX reference mirroring the PyTorch module (for verification)."""
    logits = logits.astype(jnp.float32)
    y_onehot = jax.nn.one_hot(targets, num_classes, dtype=jnp.float32)
    y_soft = jax.nn.softmax(logits, axis=1)
    log_soft = jax.nn.log_softmax(logits, axis=1)
    ce = -jnp.sum(y_onehot * log_soft, axis=1)
    u1 = u.reshape(-1).astype(jnp.float32)
    L1 = jnp.mean(ce + alpha_train * u1 * jnp.sum(y_onehot * y_soft, axis=1))
    term = y_soft + u1[:, None] * y_onehot - y_onehot
    L2 = jnp.sum(term ** 2) / num_classes + lambda_r * jnp.sum(u1 ** 2)
    diag = jnp.sum(logits * y_onehot, axis=1)
    log_sig = jax.nn.log_sigmoid(diag)
    t = jax.nn.sigmoid(-jnp.log(u1 + 1e-8))
    kl = jnp.mean(t * (jnp.log(t) - log_sig))
    L3 = (1.0 - acc) * kl
    return L1 + L3, L1, L2, L3


if __name__ == "__main__":
    def _check(logits, targets, u, acc, num_classes, name):
        got = gcod_loss(logits, targets, u, acc, num_classes=num_classes)
        jax.block_until_ready(got)
        ref = _reference(logits, targets, u, acc, num_classes)
        for g, r in zip(got, ref):
            assert jnp.allclose(g, r, atol=1e-5, rtol=1e-5), (name, g, r)

    key = jax.random.PRNGKey(0)

    # Case 1: f32 logits, single tile / single partition.
    k1, k2, k3 = jax.random.split(jax.random.fold_in(key, 1), 3)
    B, C = 8, 4
    logits = jax.random.normal(k1, (B, C), dtype=jnp.float32)
    targets = jax.random.randint(k2, (B,), 0, C, dtype=jnp.int32)
    u = jax.random.uniform(k3, (B,), dtype=jnp.float32, minval=0.05, maxval=0.95)
    _check(logits, targets, u, 0.75, C, "f32_even")

    # Case 2: ragged batch -> two tiles, exercises the P=2 parallel partition
    # path, the clamped index map and the masking select.
    k1, k2, k3 = jax.random.split(jax.random.fold_in(key, 2), 3)
    B, C = 12, 6
    logits = jax.random.normal(k1, (B, C), dtype=jnp.float32)
    targets = jax.random.randint(k2, (B,), 0, C, dtype=jnp.int32)
    u = jax.random.uniform(k3, (B,), dtype=jnp.float32, minval=0.05, maxval=0.95)
    _check(logits, targets, u, 0.4, C, "f32_ragged_2part")

    # Case 3: bf16 logits in native dtype (kernel upcasts the VMEM tile).
    k1, k2, k3 = jax.random.split(jax.random.fold_in(key, 3), 3)
    B, C = 16, 8
    logits = jax.random.normal(k1, (B, C), dtype=jnp.float32).astype(jnp.bfloat16)
    targets = jax.random.randint(k2, (B,), 0, C, dtype=jnp.int32)
    u = jax.random.uniform(k3, (B,), dtype=jnp.float32, minval=0.05, maxval=0.95)
    _check(logits, targets, u, 0.6, C, "bf16")

    # Case 4: C > lane chunk -> exercises the streamed two-pass reduction.
    k1, k2, k3 = jax.random.split(jax.random.fold_in(key, 4), 3)
    B, C = 48, 1024
    logits = jax.random.normal(k1, (B, C), dtype=jnp.float32)
    targets = jax.random.randint(k2, (B,), 0, C, dtype=jnp.int32)
    u = jax.random.uniform(k3, (B,), dtype=jnp.float32, minval=0.05, maxval=0.95)
    _check(logits, targets, u, 0.3, C, "f32_chunked_C")

    print("KERNEL_OK")
</pallas_src>

<mosaic_0001>
module attributes {stable_mosaic.version = 11 : i64} {
  func.func @_gcod_kernel(%arg0: i32, %arg1: i32, %arg2: memref<8x4xf32, #tpu.memory_space<vmem>>, %arg3: memref<8x1xi32, #tpu.memory_space<vmem>>, %arg4: memref<8x1xf32, #tpu.memory_space<vmem>>, %arg5: memref<8x128xf32, #tpu.memory_space<vmem>>, %arg6: memref<8x1xf32, #tpu.memory_space<vmem>>, %arg7: memref<8x1xf32, #tpu.memory_space<vmem>>, %arg8: memref<8x1xf32, #tpu.memory_space<vmem>>, %arg9: memref<8x1xf32, #tpu.memory_space<vmem>>, %arg10: memref<8x4xi32, #tpu.memory_space<vmem>>) attributes {dimension_semantics = [#tpu.dimension_semantics<parallel>, #tpu.dimension_semantics<arbitrary>], iteration_bounds = array<i64: 1, 1>, scalar_prefetch = 0 : i64, scratch_operands = 5 : i64, tpu.core_type = #tpu.core_type<tc>, window_params = [{transform_indices = @transform_0, window_bounds = array<i64: 8, 4>}, {transform_indices = @transform_1, window_bounds = array<i64: 8, 1>}, {transform_indices = @transform_2, window_bounds = array<i64: 8, 1>}, {transform_indices = @transform_3, window_bounds = array<i64: 8, 128>}]} {
    %c0_i32 = arith.constant 0 : i32
    %0 = arith.cmpi eq, %arg1, %c0_i32 : i32
    %1 = arith.extui %0 : i1 to i32
    %c0_i32_0 = arith.constant 0 : i32
    %2 = arith.cmpi ne, %1, %c0_i32_0 : i32
    scf.if %2 {
      %cst_39 = arith.constant 0.000000e+00 : f32
      %88 = vector.broadcast %cst_39 : f32 to vector<8x1xf32>
      %c0_40 = arith.constant 0 : index
      %c0_41 = arith.constant 0 : index
      %89 = vector.load %arg6[%c0_40, %c0_41] : memref<8x1xf32, #tpu.memory_space<vmem>>, vector<8x1xf32>
      tpu.vector_store %arg6[%c0_40, %c0_41], %88 {strides = array<i32>} : memref<8x1xf32, #tpu.memory_space<vmem>>, vector<8x1xf32>,
      %cst_42 = arith.constant 0.000000e+00 : f32
      %90 = vector.broadcast %cst_42 : f32 to vector<8x1xf32>
      %c0_43 = arith.constant 0 : index
      %c0_44 = arith.constant 0 : index
      %91 = vector.load %arg7[%c0_43, %c0_44] : memref<8x1xf32, #tpu.memory_space<vmem>>, vector<8x1xf32>
      tpu.vector_store %arg7[%c0_43, %c0_44], %90 {strides = array<i32>} : memref<8x1xf32, #tpu.memory_space<vmem>>, vector<8x1xf32>,
      %cst_45 = arith.constant 0.000000e+00 : f32
      %92 = vector.broadcast %cst_45 : f32 to vector<8x1xf32>
      %c0_46 = arith.constant 0 : index
      %c0_47 = arith.constant 0 : index
      %93 = vector.load %arg8[%c0_46, %c0_47] : memref<8x1xf32, #tpu.memory_space<vmem>>, vector<8x1xf32>
      tpu.vector_store %arg8[%c0_46, %c0_47], %92 {strides = array<i32>} : memref<8x1xf32, #tpu.memory_space<vmem>>, vector<8x1xf32>,
      %cst_48 = arith.constant 0.000000e+00 : f32
      %94 = vector.broadcast %cst_48 : f32 to vector<8x1xf32>
      %c0_49 = arith.constant 0 : index
      %c0_50 = arith.constant 0 : index
      %95 = vector.load %arg9[%c0_49, %c0_50] : memref<8x1xf32, #tpu.memory_space<vmem>>, vector<8x1xf32>
      tpu.vector_store %arg9[%c0_49, %c0_50], %94 {strides = array<i32>} : memref<8x1xf32, #tpu.memory_space<vmem>>, vector<8x1xf32>,
      %96 = tpu.iota {dimensions = array<i32: 1>} : vector<8x4xi32>
      %c0_51 = arith.constant 0 : index
      %c0_52 = arith.constant 0 : index
      %97 = vector.load %arg10[%c0_51, %c0_52] : memref<8x4xi32, #tpu.memory_space<vmem>>, vector<8x4xi32>
      tpu.vector_store %arg10[%c0_51, %c0_52], %96 {strides = array<i32>} : memref<8x4xi32, #tpu.memory_space<vmem>>, vector<8x4xi32>,
    } else {
    }
    %c0 = arith.constant 0 : index
    %c0_1 = arith.constant 0 : index
    %3 = vector.load %arg3[%c0, %c0_1] : memref<8x1xi32, #tpu.memory_space<vmem>>, vector<8x1xi32>
    %c0_2 = arith.constant 0 : index
    %c0_3 = arith.constant 0 : index
    %4 = vector.load %arg4[%c0_2, %c0_3] : memref<8x1xf32, #tpu.memory_space<vmem>>, vector<8x1xf32>
    %c0_4 = arith.constant 0 : index
    %c0_5 = arith.constant 0 : index
    %5 = vector.load %arg2[%c0_4, %c0_5] : memref<8x4xf32, #tpu.memory_space<vmem>>, vector<8x4xf32>
    %c0_6 = arith.constant 0 : index
    %c0_7 = arith.constant 0 : index
    %6 = vector.load %arg10[%c0_6, %c0_7] : memref<8x4xi32, #tpu.memory_space<vmem>>, vector<1x4xi32>
    %7 = vector.broadcast %6 : vector<1x4xi32> to vector<8x4xi32>
    %8 = vector.broadcast %3 : vector<8x1xi32> to vector<8x4xi32>
    %9 = arith.cmpi eq, %7, %8 : vector<8x4xi32>
    %cst = arith.constant 0.000000e+00 : f32
    %10 = vector.broadcast %cst : f32 to vector<8x4xf32>
    %11 = arith.select %9, %5, %10 : vector<8x4xi1>, vector<8x4xf32>
    %cst_8 = arith.constant dense<0.000000e+00> : vector<8xf32>
    %12 = vector.multi_reduction <add>, %11, %cst_8 [1] : vector<8x4xf32> to vector<8xf32>
    %13 = vector.shape_cast %12 : vector<8xf32> to vector<8x1xf32>
    %cst_9 = arith.constant dense<0xFF800000> : vector<8xf32>
    %14 = vector.multi_reduction <maximumf>, %5, %cst_9 [1] : vector<8x4xf32> to vector<8xf32>
    %15 = vector.shape_cast %14 : vector<8xf32> to vector<8x1xf32>
    %16 = vector.broadcast %15 : vector<8x1xf32> to vector<8x4xf32>
    %17 = arith.subf %5, %16 : vector<8x4xf32>
    %18 = math.exp %17 : vector<8x4xf32>
    %cst_10 = arith.constant dense<0.000000e+00> : vector<8xf32>
    %19 = vector.multi_reduction <add>, %18, %cst_10 [1] : vector<8x4xf32> to vector<8xf32>
    %20 = vector.shape_cast %19 : vector<8xf32> to vector<8x1xf32>
    %21 = arith.mulf %18, %18 : vector<8x4xf32>
    %cst_11 = arith.constant dense<0.000000e+00> : vector<8xf32>
    %22 = vector.multi_reduction <add>, %21, %cst_11 [1] : vector<8x4xf32> to vector<8xf32>
    %23 = vector.shape_cast %22 : vector<8xf32> to vector<8x1xf32>
    %24 = tpu.reciprocal %20 : vector<8x1xf32> -> vector<8x1xf32>
    %25 = math.log %20 : vector<8x1xf32>
    %26 = arith.addf %15, %25 : vector<8x1xf32>
    %27 = arith.subf %26, %13 : vector<8x1xf32>
    %28 = arith.subf %13, %15 : vector<8x1xf32>
    %29 = math.exp %28 : vector<8x1xf32>
    %30 = arith.mulf %29, %24 : vector<8x1xf32>
    %31 = arith.mulf %4, %30 : vector<8x1xf32>
    %cst_12 = arith.constant 5.000000e+00 : f32
    %32 = vector.broadcast %cst_12 : f32 to vector<8x1xf32>
    %33 = arith.mulf %32, %31 : vector<8x1xf32>
    %34 = arith.addf %27, %33 : vector<8x1xf32>
    %35 = arith.addf %30, %4 : vector<8x1xf32>
    %cst_13 = arith.constant 1.000000e+00 : f32
    %36 = vector.broadcast %cst_13 : f32 to vector<8x1xf32>
    %37 = arith.subf %35, %36 : vector<8x1xf32>
    %38 = arith.mulf %24, %24 : vector<8x1xf32>
    %39 = arith.mulf %23, %38 : vector<8x1xf32>
    %40 = arith.mulf %30, %30 : vector<8x1xf32>
    %41 = arith.subf %39, %40 : vector<8x1xf32>
    %42 = arith.mulf %37, %37 : vector<8x1xf32>
    %43 = arith.addf %41, %42 : vector<8x1xf32>
    %44 = arith.mulf %4, %4 : vector<8x1xf32>
    %cst_14 = arith.constant 9.99999993E-9 : f32
    %45 = vector.broadcast %cst_14 : f32 to vector<8x1xf32>
    %46 = arith.addf %4, %45 : vector<8x1xf32>
    %cst_15 = arith.constant 1.000000e+00 : f32
    %47 = vector.broadcast %cst_15 : f32 to vector<8x1xf32>
    %48 = arith.addf %47, %46 : vector<8x1xf32>
    %49 = tpu.reciprocal %48 : vector<8x1xf32> -> vector<8x1xf32>
    %50 = math.log %48 : vector<8x1xf32>
    %cst_16 = arith.constant 0.000000e+00 : f32
    %51 = vector.broadcast %cst_16 : f32 to vector<8x1xf32>
    %52 = arith.subf %51, %50 : vector<8x1xf32>
    %cst_17 = arith.constant 0.000000e+00 : f32
    %53 = vector.broadcast %cst_17 : f32 to vector<8x1xf32>
    %54 = arith.subf %53, %13 : vector<8x1xf32>
    %cst_18 = arith.constant 0.000000e+00 : f32
    %55 = vector.broadcast %cst_18 : f32 to vector<8x1xf32>
    %56 = arith.maximumf %54, %55 : vector<8x1xf32>
    %57 = vector.broadcast %cst_18 : f32 to vector<8x1xf32>
    %58 = arith.subf %54, %57 : vector<8x1xf32>
    %59 = arith.cmpf one, %58, %58 : vector<8x1xf32>
    %60 = vector.broadcast %cst_18 : f32 to vector<8x1xf32>
    %61 = arith.addf %54, %60 : vector<8x1xf32>
    %62 = math.absf %58 : vector<8x1xf32>
    %cst_19 = arith.constant 0.000000e+00 : f32
    %63 = vector.broadcast %cst_19 : f32 to vector<8x1xf32>
    %64 = arith.subf %63, %62 : vector<8x1xf32>
    %65 = math.exp %64 : vector<8x1xf32>
    %66 = math.log1p %65 : vector<8x1xf32>
    %67 = arith.addf %56, %66 : vector<8x1xf32>
    %68 = arith.select %59, %61, %67 : vector<8x1xi1>, vector<8x1xf32>
    %cst_20 = arith.constant 0.000000e+00 : f32
    %69 = vector.broadcast %cst_20 : f32 to vector<8x1xf32>
    %70 = arith.subf %69, %68 : vector<8x1xf32>
    %71 = arith.subf %52, %70 : vector<8x1xf32>
    %72 = arith.mulf %49, %71 : vector<8x1xf32>
    %c0_21 = arith.constant 0 : index
    %c0_22 = arith.constant 0 : index
    %73 = vector.load %arg6[%c0_21, %c0_22] : memref<8x1xf32, #tpu.memory_space<vmem>>, vector<8x1xf32>
    %74 = arith.addf %73, %34 : vector<8x1xf32>
    %c0_23 = arith.constant 0 : index
    %c0_24 = arith.constant 0 : index
    %75 = vector.load %arg6[%c0_23, %c0_24] : memref<8x1xf32, #tpu.memory_space<vmem>>, vector<8x1xf32>
    tpu.vector_store %arg6[%c0_23, %c0_24], %74 {strides = array<i32>} : memref<8x1xf32, #tpu.memory_space<vmem>>, vector<8x1xf32>,
    %c0_25 = arith.constant 0 : index
    %c0_26 = arith.constant 0 : index
    %76 = vector.load %arg7[%c0_25, %c0_26] : memref<8x1xf32, #tpu.memory_space<vmem>>, vector<8x1xf32>
    %77 = arith.addf %76, %43 : vector<8x1xf32>
    %c0_27 = arith.constant 0 : index
    %c0_28 = arith.constant 0 : index
    %78 = vector.load %arg7[%c0_27, %c0_28] : memref<8x1xf32, #tpu.memory_space<vmem>>, vector<8x1xf32>
    tpu.vector_store %arg7[%c0_27, %c0_28], %77 {strides = array<i32>} : memref<8x1xf32, #tpu.memory_space<vmem>>, vector<8x1xf32>,
    %c0_29 = arith.constant 0 : index
    %c0_30 = arith.constant 0 : index
    %79 = vector.load %arg8[%c0_29, %c0_30] : memref<8x1xf32, #tpu.memory_space<vmem>>, vector<8x1xf32>
    %80 = arith.addf %79, %44 : vector<8x1xf32>
    %c0_31 = arith.constant 0 : index
    %c0_32 = arith.constant 0 : index
    %81 = vector.load %arg8[%c0_31, %c0_32] : memref<8x1xf32, #tpu.memory_space<vmem>>, vector<8x1xf32>
    tpu.vector_store %arg8[%c0_31, %c0_32], %80 {strides = array<i32>} : memref<8x1xf32, #tpu.memory_space<vmem>>, vector<8x1xf32>,
    %c0_33 = arith.constant 0 : index
    %c0_34 = arith.constant 0 : index
    %82 = vector.load %arg9[%c0_33, %c0_34] : memref<8x1xf32, #tpu.memory_space<vmem>>, vector<8x1xf32>
    %83 = arith.addf %82, %72 : vector<8x1xf32>
    %c0_35 = arith.constant 0 : index
    %c0_36 = arith.constant 0 : index
    %84 = vector.load %arg9[%c0_35, %c0_36] : memref<8x1xf32, #tpu.memory_space<vmem>>, vector<8x1xf32>
    tpu.vector_store %arg9[%c0_35, %c0_36], %83 {strides = array<i32>} : memref<8x1xf32, #tpu.memory_space<vmem>>, vector<8x1xf32>,
    %c0_i32_37 = arith.constant 0 : i32
    %85 = arith.cmpi eq, %arg1, %c0_i32_37 : i32
    %86 = arith.extui %85 : i1 to i32
    %c0_i32_38 = arith.constant 0 : i32
    %87 = arith.cmpi ne, %86, %c0_i32_38 : i32
    scf.if %87 {
      %c0_39 = arith.constant 0 : index
      %c0_40 = arith.constant 0 : index
      %88 = vector.load %arg6[%c0_39, %c0_40] : memref<8x1xf32, #tpu.memory_space<vmem>>, vector<8x1xf32>
      %89 = vector.shape_cast %88 : vector<8x1xf32> to vector<1x8x1xf32>
      %cst_41 = arith.constant dense<0.000000e+00> : vector<1xf32>
      %90 = vector.multi_reduction <add>, %89, %cst_41 [1, 2] : vector<1x8x1xf32> to vector<1xf32>
      %91 = vector.shape_cast %90 : vector<1xf32> to vector<1x1x1xf32>
      %92 = vector.extract %91[0, 0, 0] : f32 from vector<1x1x1xf32>
      %c0_42 = arith.constant 0 : index
      %c0_43 = arith.constant 0 : index
      %93 = vector.load %arg7[%c0_42, %c0_43] : memref<8x1xf32, #tpu.memory_space<vmem>>, vector<8x1xf32>
      %94 = vector.shape_cast %93 : vector<8x1xf32> to vector<1x8x1xf32>
      %cst_44 = arith.constant dense<0.000000e+00> : vector<1xf32>
      %95 = vector.multi_reduction <add>, %94, %cst_44 [1, 2] : vector<1x8x1xf32> to vector<1xf32>
      %96 = vector.shape_cast %95 : vector<1xf32> to vector<1x1x1xf32>
      %97 = vector.extract %96[0, 0, 0] : f32 from vector<1x1x1xf32>
      %c0_45 = arith.constant 0 : index
      %c0_46 = arith.constant 0 : index
      %98 = vector.load %arg8[%c0_45, %c0_46] : memref<8x1xf32, #tpu.memory_space<vmem>>, vector<8x1xf32>
      %99 = vector.shape_cast %98 : vector<8x1xf32> to vector<1x8x1xf32>
      %cst_47 = arith.constant dense<0.000000e+00> : vector<1xf32>
      %100 = vector.multi_reduction <add>, %99, %cst_47 [1, 2] : vector<1x8x1xf32> to vector<1xf32>
      %101 = vector.shape_cast %100 : vector<1xf32> to vector<1x1x1xf32>
      %102 = vector.extract %101[0, 0, 0] : f32 from vector<1x1x1xf32>
      %c0_48 = arith.constant 0 : index
      %c0_49 = arith.constant 0 : index
      %103 = vector.load %arg9[%c0_48, %c0_49] : memref<8x1xf32, #tpu.memory_space<vmem>>, vector<8x1xf32>
      %104 = vector.shape_cast %103 : vector<8x1xf32> to vector<1x8x1xf32>
      %cst_50 = arith.constant dense<0.000000e+00> : vector<1xf32>
      %105 = vector.multi_reduction <add>, %104, %cst_50 [1, 2] : vector<1x8x1xf32> to vector<1xf32>
      %106 = vector.shape_cast %105 : vector<1xf32> to vector<1x1x1xf32>
      %107 = vector.extract %106[0, 0, 0] : f32 from vector<1x1x1xf32>
      %108 = tpu.iota {dimensions = array<i32: 0>} : vector<8x128xi32>
      %109 = tpu.iota {dimensions = array<i32: 1>} : vector<8x128xi32>
      %c0_i32_51 = arith.constant 0 : i32
      %110 = vector.broadcast %c0_i32_51 : i32 to vector<8x128xi32>
      %111 = arith.cmpi eq, %108, %110 : vector<8x128xi32>
      %c0_i32_52 = arith.constant 0 : i32
      %112 = vector.broadcast %c0_i32_52 : i32 to vector<8x128xi32>
      %113 = arith.cmpi eq, %109, %112 : vector<8x128xi32>
      %114 = arith.andi %111, %113 : vector<8x128xi1>
      %cst_53 = arith.constant 0.000000e+00 : f32
      %115 = vector.broadcast %92 : f32 to vector<8x128xf32>
      %116 = vector.broadcast %cst_53 : f32 to vector<8x128xf32>
      %117 = arith.select %114, %115, %116 : vector<8x128xi1>, vector<8x128xf32>
      %c0_i32_54 = arith.constant 0 : i32
      %118 = vector.broadcast %c0_i32_54 : i32 to vector<8x128xi32>
      %119 = arith.cmpi eq, %108, %118 : vector<8x128xi32>
      %c1_i32 = arith.constant 1 : i32
      %120 = vector.broadcast %c1_i32 : i32 to vector<8x128xi32>
      %121 = arith.cmpi eq, %109, %120 : vector<8x128xi32>
      %122 = arith.andi %119, %121 : vector<8x128xi1>
      %123 = vector.broadcast %97 : f32 to vector<8x128xf32>
      %124 = arith.select %122, %123, %117 : vector<8x128xi1>, vector<8x128xf32>
      %c0_i32_55 = arith.constant 0 : i32
      %125 = vector.broadcast %c0_i32_55 : i32 to vector<8x128xi32>
      %126 = arith.cmpi eq, %108, %125 : vector<8x128xi32>
      %c2_i32 = arith.constant 2 : i32
      %127 = vector.broadcast %c2_i32 : i32 to vector<8x128xi32>
      %128 = arith.cmpi eq, %109, %127 : vector<8x128xi32>
      %129 = arith.andi %126, %128 : vector<8x128xi1>
      %130 = vector.broadcast %102 : f32 to vector<8x128xf32>
      %131 = arith.select %129, %130, %124 : vector<8x128xi1>, vector<8x128xf32>
      %c0_i32_56 = arith.constant 0 : i32
      %132 = vector.broadcast %c0_i32_56 : i32 to vector<8x128xi32>
      %133 = arith.cmpi eq, %108, %132 : vector<8x128xi32>
      %c3_i32 = arith.constant 3 : i32
      %134 = vector.broadcast %c3_i32 : i32 to vector<8x128xi32>
      %135 = arith.cmpi eq, %109, %134 : vector<8x128xi32>
      %136 = arith.andi %133, %135 : vector<8x128xi1>
      %137 = vector.broadcast %107 : f32 to vector<8x128xf32>
      %138 = arith.select %136, %137, %131 : vector<8x128xi1>, vector<8x128xf32>
      %c0_57 = arith.constant 0 : index
      %c0_58 = arith.constant 0 : index
      %139 = vector.load %arg5[%c0_57, %c0_58] : memref<8x128xf32, #tpu.memory_space<vmem>>, vector<8x128xf32>
      tpu.vector_store %arg5[%c0_57, %c0_58], %138 {strides = array<i32>} : memref<8x128xf32, #tpu.memory_space<vmem>>, vector<8x128xf32>,
    } else {
    }
    return
  }
  func.func @transform_0(%arg0: i32, %arg1: i32) -> (i32, i32) {
    %c1_i32 = arith.constant 1 : i32
    %0 = arith.muli %arg0, %c1_i32 : i32
    %1 = arith.addi %0, %arg1 : i32
    %c0_i32 = arith.constant 0 : i32
    %2 = arith.minsi %1, %c0_i32 : i32
    %c0_i32_0 = arith.constant 0 : i32
    %c0_i32_1 = arith.constant 0 : i32
    return %2, %c0_i32_0 : i32, i32
  }
  func.func @transform_1(%arg0: i32, %arg1: i32) -> (i32, i32) {
    %c1_i32 = arith.constant 1 : i32
    %0 = arith.muli %arg0, %c1_i32 : i32
    %1 = arith.addi %0, %arg1 : i32
    %c0_i32 = arith.constant 0 : i32
    %2 = arith.minsi %1, %c0_i32 : i32
    %c0_i32_0 = arith.constant 0 : i32
    %c0_i32_1 = arith.constant 0 : i32
    return %2, %c0_i32_0 : i32, i32
  }
  func.func @transform_2(%arg0: i32, %arg1: i32) -> (i32, i32) {
    %c1_i32 = arith.constant 1 : i32
    %0 = arith.muli %arg0, %c1_i32 : i32
    %1 = arith.addi %0, %arg1 : i32
    %c0_i32 = arith.constant 0 : i32
    %2 = arith.minsi %1, %c0_i32 : i32
    %c0_i32_0 = arith.constant 0 : i32
    %c0_i32_1 = arith.constant 0 : i32
    return %2, %c0_i32_0 : i32, i32
  }
  func.func @transform_3(%arg0: i32, %arg1: i32) -> (i32, i32) {
    %c0_i32 = arith.constant 0 : i32
    %c0_i32_0 = arith.constant 0 : i32
    return %arg0, %c0_i32 : i32, i32
  }
}

</mosaic_0001>

<llo_original>
// kernel: tpu_custom_call.1
$region0: #{tpu_custom_call.1}
  #allocation0 [shape = 'u32[]', space=smem, size = 0x4, offset = 0x4, fixed_abs, tag = 'smem constant byte address 0x4 - core index']
  #allocation1 [shape = 'u32[144,128]{1,0:T(1,128)}', space=vmem, size = 0x12000, scoped, tag = 'internal scratch']
  #allocation2 [shape = 'f32[8,1]{1,0:T(8,128)}', space=vmem, size = 0x1000, scoped, tag = 'scratch operand']
  #allocation3 [shape = 'f32[8,1]{1,0:T(8,128)}', space=vmem, size = 0x1000, scoped, tag = 'scratch operand']
  #allocation4 [shape = 'f32[8,1]{1,0:T(8,128)}', space=vmem, size = 0x1000, scoped, tag = 'scratch operand']
  #allocation5 [shape = 'f32[8,1]{1,0:T(8,128)}', space=vmem, size = 0x1000, scoped, tag = 'scratch operand']
  #allocation6 [shape = 's32[8,4]{1,0:T(8,128)}', space=vmem, size = 0x1000, scoped, tag = 'scratch operand']
  %s0 = inlined_call_operand.vmem [shape: f32[8,4], index: 0, kind: input, shape index: {}]
  %s1 = inlined_call_operand.vmem [shape: s32[8,1], index: 1, kind: input, shape index: {}]
  %s2 = inlined_call_operand.vmem [shape: f32[8,1], index: 2, kind: input, shape index: {}]
  %s3 = inlined_call_operand.hbm [shape: f32[8,128], index: 3, kind: output, shape index: {}]
  %s4 = sld [smem:[#allocation0]]
  $region30: #{tpu_custom_call.1} parent=0
    _
  %s6 = ssub.s32 1, %s4
  %s7 = scalar_select 0, %s6, %s4
  $region1: #{tpu_custom_call.1} parent=0
    #allocation7 [shape = 'u8[4096]{0}', space=vmem, size = 0x1000, scoped, tag = 'output window, operand 0, single buffered']
    #allocation8 [shape = 's32[1]{0}', space=sflag, size = 0x4, scoped, tag = 'scoped memory for tpu_custom_call.1']
    %8 = vsyncpa [#allocation8], 0
    // Predicated region
    $region2: #{tpu_custom_call.1} parent=1 // pred_check
      _
    $region3: #{tpu_custom_call.1} parent=1 // pred_check_branch
      %10 = sbr.rel (0) target = $region5
    $region4: #{tpu_custom_call.1} parent=1 // pred_region
      %s11 = sadd.s32 0, 0
      %p12 = scmp.lt.s32.totalorder %s11, 0
      %s13 = scalar_select %p12, %s11, 0
      %p14 = scmp.lt.s32.totalorder %s13, 0
      %s15 = scalar_select %p14, %s13, 0
      %s16 = smul.addr %s15, 8
      %s17 = scalar_lea.vmem %s0, %s16
      %s18 = sadd.s32 0, 0
      %p19 = scmp.lt.s32.totalorder %s18, 0
      %s20 = scalar_select %p19, %s18, 0
    $region5: #{tpu_custom_call.1} parent=1 // pred_fallthru
      _
    // Predicated region
    $region6: #{tpu_custom_call.1} parent=1 // pred_check
      _
    $region7: #{tpu_custom_call.1} parent=1 // pred_check_branch
      %22 = sbr.rel (0) target = $region9
    $region8: #{tpu_custom_call.1} parent=1 // pred_region
      %s23 = sadd.s32 0, 0
      %p24 = scmp.lt.s32.totalorder %s23, 0
      %s25 = scalar_select %p24, %s23, 0
      %p26 = scmp.lt.s32.totalorder %s25, 0
      %s27 = scalar_select %p26, %s25, 0
      %s28 = smul.addr %s27, 8
      %s29 = scalar_lea.vmem %s1, %s28
      %s30 = sadd.s32 0, 0
      %p31 = scmp.lt.s32.totalorder %s30, 0
      %s32 = scalar_select %p31, %s30, 0
    $region9: #{tpu_custom_call.1} parent=1 // pred_fallthru
      _
    // Predicated region
    $region10: #{tpu_custom_call.1} parent=1 // pred_check
      _
    $region11: #{tpu_custom_call.1} parent=1 // pred_check_branch
      %34 = sbr.rel (0) target = $region13
    $region12: #{tpu_custom_call.1} parent=1 // pred_region
      %s35 = sadd.s32 0, 0
      %p36 = scmp.lt.s32.totalorder %s35, 0
      %s37 = scalar_select %p36, %s35, 0
      %p38 = scmp.lt.s32.totalorder %s37, 0
      %s39 = scalar_select %p38, %s37, 0
      %s40 = smul.addr %s39, 8
      %s41 = scalar_lea.vmem %s2, %s40
      %s42 = sadd.s32 0, 0
      %p43 = scmp.lt.s32.totalorder %s42, 0
      %s44 = scalar_select %p43, %s42, 0
    $region13: #{tpu_custom_call.1} parent=1 // pred_fallthru
      _
    %s45 = sadd.s32 0, 0
    %p46 = scmp.lt.s32.totalorder %s45, 0
    %s47 = scalar_select %p46, %s45, 0
    %p48 = scmp.lt.s32.totalorder %s47, 0
    %s49 = scalar_select %p48, %s47, 0
    %s50 = smul.addr %s49, 8
    %s51 = scalar_lea.vmem %s0, %s50
    %s52 = sadd.s32 0, 0
    %p53 = scmp.lt.s32.totalorder %s52, 0
    %s54 = scalar_select %p53, %s52, 0
    %p55 = scmp.lt.s32.totalorder %s54, 0
    %s56 = scalar_select %p55, %s54, 0
    %s57 = smul.addr %s56, 8
    %s58 = scalar_lea.vmem %s1, %s57
    %s59 = sadd.s32 0, 0
    %p60 = scmp.lt.s32.totalorder %s59, 0
    %s61 = scalar_select %p60, %s59, 0
    %p62 = scmp.lt.s32.totalorder %s61, 0
    %s63 = scalar_select %p62, %s61, 0
    %s64 = smul.addr %s63, 8
    %s65 = scalar_lea.vmem %s2, %s64
    %s66 = sadd.s32 0, 0
    %p67 = scmp.lt.s32.totalorder %s66, 0
    %s68 = scalar_select %p67, %s66, 0
    %p69 = scmp.lt.s32.totalorder %s68, 0
    %s70 = scalar_select %p69, %s68, 0
    %s71 = smul.addr %s70, 8
    %s72 = scalar_lea.vmem %s0, %s71
    %s73 = sadd.s32 0, 0
    %p74 = scmp.lt.s32.totalorder %s73, 0
    %s75 = scalar_select %p74, %s73, 0
    %s76 = sadd.s32 0, 0
    %p77 = scmp.lt.s32.totalorder %s76, 0
    %s78 = scalar_select %p77, %s76, 0
    %p79 = scmp.lt.s32.totalorder %s78, 0
    %s80 = scalar_select %p79, %s78, 0
    %s81 = smul.addr %s80, 8
    %s82 = scalar_lea.vmem %s1, %s81
    %s83 = sadd.s32 0, 0
    %p84 = scmp.lt.s32.totalorder %s83, 0
    %s85 = scalar_select %p84, %s83, 0
    %s86 = sadd.s32 0, 0
    %p87 = scmp.lt.s32.totalorder %s86, 0
    %s88 = scalar_select %p87, %s86, 0
    %p89 = scmp.lt.s32.totalorder %s88, 0
    %s90 = scalar_select %p89, %s88, 0
    %s91 = smul.addr %s90, 8
    %s92 = scalar_lea.vmem %s2, %s91
    %s93 = sadd.s32 0, 0
    %p94 = scmp.lt.s32.totalorder %s93, 0
    %s95 = scalar_select %p94, %s93, 0
    %p96 = scmp.eq.s32.totalorder 0, 0
    // Predicated region
    $region14: #{tpu_custom_call.1} parent=1 // pred_check
      %p97 = pneg %p96
    $region15: #{tpu_custom_call.1} parent=1 // pred_check_branch
      %99 = sbr.rel (%p97) target = $region17
    $region16: #{tpu_custom_call.1} parent=1 // pred_region
      %vm100 = vcmask 7168
      %101 = vst.msk [vmem:[#allocation2] sm:$0xff] %vm100, 0.0
      %102 = vst.msk [vmem:[#allocation3] sm:$0xff] %vm100, 0.0
      %103 = vst.msk [vmem:[#allocation4] sm:$0xff] %vm100, 0.0
      %104 = vst.msk [vmem:[#allocation5] sm:$0xff] %vm100, 0.0
      %v105 = vlaneseq
      %v106 = vand.u32 %v105, 127
      %vm107 = vcmask 31744
      %108 = vst.msk [vmem:[#allocation6] sm:$0xff] %vm107, %v106
    $region17: #{tpu_custom_call.1} parent=1 // pred_fallthru
      _
    %v109 = vld [vmem:[%s82] sm:$0xff]
    %v110 = vld [vmem:[%s92] sm:$0xff]
    %v111 = vld [vmem:[%s72] sm:$0xff]
    %v112 = vld [vmem:[#allocation6] sm:$0x1]
    %v113 = vlaneseq
    %v114 = vshrl.u32 %v113, 7
    %v115 = vsub.s32 0, %v114
    %v116 = vrot.slane %v112, %v115
    %117 = vset.pattern.permute.xlu0 0
    %118 = vperm.xlu0 %117, %v109
    %v119 = vpop.permute.xlu0 %118
    %vm120 = vcmp.eq.s32.totalorder %v116, %v119
    %v121 = vsel %vm120, %v111, 0.0
    %vm122 = vcmask 31744
    %v123 = vsel %vm122, %v121, 0.0
    %124 = vadd.xlane.f32.xlu0 %v123
    %v125 = vpop.xlane.xlu0 %124
    %v126 = vsel %vm122, %v111, -inf
    %127 = vmax.xlane.f32.xlu0 %v126
    %v128 = vpop.xlane.xlu0 %127
    %v129 = vsub.f32 %v111, %v128
    %v130 = vmul.f32 %v129, 1.442695
    %v131 = vpow.pop %v130
    %v132 = vsel %vm122, %v131, 0.0
    %133 = vadd.xlane.f32.xlu0 %v132
    %v134 = vpop.xlane.xlu0 %133
    %v135 = vmul.f32 %v131, %v131
    %v136 = vsel %vm122, %v135, 0.0
    %137 = vadd.xlane.f32.xlu0 %v136
    %v138 = vpop.xlane.xlu0 %137
    %v139 = vrcp.pop %v134
    %v140 = vlog2.pop %v134
    %v141 = vmul.f32 %v140, 0.6931472
    %v142 = vadd.f32 %v128, %v141
    %v143 = vsub.f32 %v142, %v125
    %v144 = vsub.f32 %v125, %v128
    %v145 = vmul.f32 %v144, 1.442695
    %v146 = vpow.pop %v145
    %v147 = vmul.f32 %v146, %v139
    %v148 = vmul.f32 %v110, %v147
    %v149 = vmul.f32 %v148, 5.0
    %v150 = vadd.f32 %v143, %v149
    %v151 = vadd.f32 %v147, %v110
    %v152 = vsub.f32 %v151, 1.0
    %v153 = vmul.f32 %v139, %v139
    %v154 = vmul.f32 %v138, %v153
    %v155 = vmul.f32 %v147, %v147
    %v156 = vsub.f32 %v154, %v155
    %v157 = vmul.f32 %v152, %v152
    %v158 = vadd.f32 %v156, %v157
    %v159 = vmul.f32 %v110, %v110
    %v160 = vadd.f32 %v110, 1e-08
    %v161 = vadd.f32 %v160, 1.0
    %v162 = vrcp.pop %v161
    %v163 = vlog2.pop %v161
    %v164 = vmul.f32 %v163, 0.6931472
    %v165 = vsub.f32 0.0, %v164
    %v166 = vsub.f32 0.0, %v125
    %v167 = vmax.f32 %v166, 0.0
    %vm168 = vcmp.ne.f32.partialorder %v166, %v166
    %v169 = vadd.f32 %v166, 0.0
    %v170 = vand.u32 2147483647, %v166
    %v171 = vsub.f32 0.0, %v170
    %v172 = vmul.f32 %v171, 1.442695
    %v173 = vpow.pop %v172
    %v174 = vadd.f32 %v173, 1.0
    %v175 = vlog2.pop %v174
    %v176 = vmul.f32 %v175, 0.6931472
    %v177 = vmul.f32 -0.5, %v173
    %v178 = vadd.f32 %v177, 1.0
    %v179 = vmul.f32 %v178, %v173
    %v180 = vand.u32 2147483647, %v173
    %vm181 = vcmp.lt.f32.partialorder %v180, 0.0004427343
    %v182 = vsel %vm181, %v179, %v176
    %v183 = vadd.f32 %v167, %v182
    %v184 = vsel %vm168, %v169, %v183
    %v185 = vsub.f32 0.0, %v184
    %v186 = vsub.f32 %v165, %v185
    %v187 = vmul.f32 %v162, %v186
    %v188 = vld [vmem:[#allocation2] sm:$0xff]
    %v189 = vadd.f32 %v188, %v150
    %vm190 = vcmask 7168
    %191 = vst.msk [vmem:[#allocation2] sm:$0xff] %vm190, %v189
    %v192 = vld [vmem:[#allocation3] sm:$0xff]
    %v193 = vadd.f32 %v192, %v158
    %194 = vst.msk [vmem:[#allocation3] sm:$0xff] %vm190, %v193
    %v195 = vld [vmem:[#allocation4] sm:$0xff]
    %v196 = vadd.f32 %v195, %v159
    %197 = vst.msk [vmem:[#allocation4] sm:$0xff] %vm190, %v196
    %v198 = vld [vmem:[#allocation5] sm:$0xff]
    %v199 = vadd.f32 %v198, %v187
    %200 = vst.msk [vmem:[#allocation5] sm:$0xff] %vm190, %v199
    // Predicated region
    $region18: #{tpu_custom_call.1} parent=1 // pred_check
      %p201 = pneg %p96
    $region19: #{tpu_custom_call.1} parent=1 // pred_check_branch
      %203 = sbr.rel (%p201) target = $region21
    $region20: #{tpu_custom_call.1} parent=1 // pred_region
      %v204 = vld [vmem:[#allocation2] sm:$0xff]
      %v205 = vsel %vm190, %v204, 0.0
      %206 = vadd.xlane.f32.xlu0 %v205
      %v207 = vpop.xlane.xlu0 %206
      %v208 = vrot.slane %v207, 4
      %v209 = vadd.f32 %v207, %v208
      %v210 = vrot.slane %v209, 2
      %v211 = vadd.f32 %v209, %v210
      %v212 = vrot.slane %v211, 1
      %v213 = vadd.f32 %v211, %v212
      %s214 = vtos %v213
      %v215 = vld [vmem:[#allocation3] sm:$0xff]
      %v216 = vsel %vm190, %v215, 0.0
      %217 = vadd.xlane.f32.xlu0 %v216
      %v218 = vpop.xlane.xlu0 %217
      %v219 = vrot.slane %v218, 4
      %v220 = vadd.f32 %v218, %v219
      %v221 = vrot.slane %v220, 2
      %v222 = vadd.f32 %v220, %v221
      %v223 = vrot.slane %v222, 1
      %v224 = vadd.f32 %v222, %v223
      %s225 = vtos %v224
      %v226 = vld [vmem:[#allocation4] sm:$0xff]
      %v227 = vsel %vm190, %v226, 0.0
      %228 = vadd.xlane.f32.xlu0 %v227
      %v229 = vpop.xlane.xlu0 %228
      %v230 = vrot.slane %v229, 4
      %v231 = vadd.f32 %v229, %v230
      %v232 = vrot.slane %v231, 2
      %v233 = vadd.f32 %v231, %v232
      %v234 = vrot.slane %v233, 1
      %v235 = vadd.f32 %v233, %v234
      %s236 = vtos %v235
      %v237 = vld [vmem:[#allocation5] sm:$0xff]
      %v238 = vsel %vm190, %v237, 0.0
      %239 = vadd.xlane.f32.xlu0 %v238
      %v240 = vpop.xlane.xlu0 %239
      %v241 = vrot.slane %v240, 4
      %v242 = vadd.f32 %v240, %v241
      %v243 = vrot.slane %v242, 2
      %v244 = vadd.f32 %v242, %v243
      %v245 = vrot.slane %v244, 1
      %v246 = vadd.f32 %v244, %v245
      %s247 = vtos %v246
      %v248 = vlaneseq
      %v249 = vshrl.u32 %v248, 7
      %v250 = vlaneseq
      %v251 = vand.u32 %v250, 127
      %vm252 = vcmp.eq.s32.totalorder %v249, 0
      %vm253 = vcmp.eq.s32.totalorder %v251, 0
      %vm254 = vmand %vm252, %vm253
      %v255 = vstv %s214
      %v256 = vsel %vm254, %v255, 0.0
      %vm257 = vcmp.eq.s32.totalorder %v251, 1
      %vm258 = vmand %vm252, %vm257
      %v259 = vstv %s225
      %v260 = vsel %vm258, %v259, %v256
      %vm261 = vcmp.eq.s32.totalorder %v251, 2
      %vm262 = vmand %vm252, %vm261
      %v263 = vstv %s236
      %v264 = vsel %vm262, %v263, %v260
      %vm265 = vcmp.eq.s32.totalorder %v251, 3
      %vm266 = vmand %vm252, %vm265
      %v267 = vstv %s247
      %v268 = vsel %vm266, %v267, %v264
      %269 = vst [vmem:[#allocation7] sm:$0xff] %v268
    $region21: #{tpu_custom_call.1} parent=1 // pred_fallthru
      _
    // Predicated region
    $region22: #{tpu_custom_call.1} parent=1 // pred_check
      _
    $region23: #{tpu_custom_call.1} parent=1 // pred_check_branch
      %271 = sbr.rel (0) target = $region25
    $region24: #{tpu_custom_call.1} parent=1 // pred_region
      %s273 = ssub.s32 128, 128
      %274 = vsyncadd [#allocation8], %s273
      %s276 = sshll.u32 [#allocation7], 4
      %s277 = int_to_ptr.vmem [resolvable:$true] %s276
      %279 = dma.vmem_to_hbm [thread:$0]  %s277, 128, %s3, [#allocation8]
    $region25: #{tpu_custom_call.1} parent=1 // pred_fallthru
      _
    // Predicated region
    $region26: #{tpu_custom_call.1} parent=1 // pred_check
      _
    $region27: #{tpu_custom_call.1} parent=1 // pred_check_branch
      %281 = sbr.rel (0) target = $region29
    $region28: #{tpu_custom_call.1} parent=1 // pred_region
      %282 = dma.done [#allocation8], 128
    $region29: #{tpu_custom_call.1} parent=1 // pred_fallthru
      _
    %283 = vsyncpa [#allocation8], 1

</llo_original>
